<compile_context>
chip_gen: v5e
topology: v5e:2x2
jax: 0.10.0
libtpu: 0.0.40
codegen_flags: <defaults>
</compile_context>

<pallas_src>
import jax
import jax.numpy as jnp
from jax import lax
from jax.experimental import pallas as pl
from jax.experimental.pallas import tpu as pltpu


def _round_up(x, m):
    return (x + m - 1) // m * m


def _working_set_bytes(tile_n, tile_d, k_pad, stream_bytes):
    """Per-grid-step VMEM working set (double-buffered pipeline blocks)."""
    x_tile = 2 * tile_n * tile_d * stream_bytes      # streamed X block
    smu = 2 * k_pad * tile_d * stream_bytes          # mu/var (constant index, still 2x by default)
    out = 2 * k_pad * tile_n * 4                     # f32 output block (also the accumulator)
    xsq = 2 * tile_n * 4                             # (1, tile_n) ||x||^2 block
    bias = 4 * k_pad * 4                             # bias + 0.5/var
    mxu = k_pad * tile_n * 4                         # matmul result staging
    return x_tile + smu + out + xsq + bias + mxu


def _vmem_caps():
    """(physical VMEM per core, budget with Mosaic-scratch headroom)."""
    cap = 64 * 1024 * 1024  # v7x per-TensorCore VMEM: the most restrictive generation
    try:
        if hasattr(pltpu, "get_tpu_info"):
            info = pltpu.get_tpu_info()
            cap = int(getattr(info, "vmem_capacity_bytes", cap)) or cap
    except Exception:
        pass
    budget = max(24 * 1024 * 1024, (cap * 3) // 4)
    return cap, budget


def _select_tiles(N, D, k_pad, stream_bytes, budget, preferred_tile_n):
    # tile_n is the lane dim of the output: multiple of 128, or the full N when
    # N < 128 (full-dim blocks are always layout-legal).
    if N < 128:
        tile_n = N
    else:
        # Guarantee >= 2 N-steps when possible (keeps both v7x TCs busy).
        tile_n = min(preferred_tile_n, _round_up(-(-N // 2), 128))
        tile_n = max(128, _round_up(tile_n, 128))
    tile_d = D

    # Shrink tile_n first (keeps D un-tiled -> single visit per output block).
    while (tile_n > 128 and tile_n % 128 == 0
           and _working_set_bytes(tile_n, tile_d, k_pad, stream_bytes) > budget):
        tile_n -= 128

    # Still over budget: tile D with a multiple-of-128 divisor of D (a divisor
    # is required so no undefined padded data enters the reduction).
    if (_working_set_bytes(tile_n, tile_d, k_pad, stream_bytes) > budget
            and D % 128 == 0):
        d_candidates = [t for t in range(128, D + 1, 128) if D % t == 0]
        for t in sorted(d_candidates, reverse=True):
            if _working_set_bytes(tile_n, t, k_pad, stream_bytes) <= budget:
                tile_d = t
                break
        else:
            tile_d = 128
    # TODO(synk): if D is huge with no multiple-of-128 divisor, zero-pad D once
    #             (one extra copy of X) instead of exceeding the budget.
    return tile_n, tile_d


def gmm_kernel(x_ref, xsq_ref, smu_ref, bias_ref, hiv_ref, out_ref):
    d = pl.program_id(1)

    # First D-step: seed the resident output block with the per-element
    # epilogue (bias - 0.5*||x||^2/var).  Later D-steps only accumulate.
    @pl.when(d == 0)
    def _():
        out_ref[...] = bias_ref[...] - hiv_ref[...] * xsq_ref[...]

    # Cross term (mu/var) @ x^T on the MXU; contraction is the last (D) dim of
    # BOTH operands, so no transposed copy of the streamed X tile is made.
    out_ref[...] += lax.dot_general(
        smu_ref[...], x_ref[...],
        dimension_numbers=(((1,), (1,)), ((), ())),
        preferred_element_type=jnp.float32)


def gmm_forward(x, mu, logvar, alpha, *, stream_dtype=None, preferred_tile_n=2048):
    """x: (N, D), mu: (K, D), logvar: (K,), alpha: (K,) -> (K, N) float32."""
    N, D = x.shape
    K = mu.shape[0]
    f32 = jnp.float32

    mu32 = mu.astype(f32)
    logvar32 = logvar.astype(f32)
    alpha32 = alpha.astype(f32)

    # Streaming dtype for the big operand.  Default: keep x's dtype (no copy).
    # Pass stream_dtype=jnp.bfloat16 to halve HBM bytes / hit native MXU rate
    # (accumulation stays f32; slight precision loss in the cross term).
    if stream_dtype is None:
        stream_dtype = x.dtype if x.dtype in (jnp.dtype(jnp.bfloat16),
                                              jnp.dtype(jnp.float32)) else f32
    stream_dtype = jnp.dtype(stream_dtype)
    x_stream = x if x.dtype == stream_dtype else x.astype(stream_dtype)

    # ||x||^2 once in the wrapper, in f32 (single fused pass over X); streamed
    # into the kernel as a (1, tile_n) block.
    x_sq = jnp.sum(jnp.square(x.astype(f32)), axis=1).reshape(1, N)

    # --- fold per-centroid constants once (tiny K-sized ops) ---
    inv_var = jnp.exp(-logvar32)                                 # (K,)
    scaled_mu = mu32 * inv_var[:, None]                          # (K, D) = Sigma^{-1} mu
    mu_sq = jnp.sum(mu32 * mu32, axis=1)                         # (K,)
    norm_const = 0.5 * D * jnp.log(2.0 * jnp.pi)
    bias = alpha32 - 0.5 * D * logvar32 - 0.5 * mu_sq * inv_var - norm_const
    half_inv_var = 0.5 * inv_var

    # Pad only the K-sized params (sublane alignment).  X is NOT copied/padded.
    k_pad = _round_up(K, 8)
    smu_p = jnp.pad(scaled_mu, ((0, k_pad - K), (0, 0))).astype(stream_dtype)
    bias_p = jnp.pad(bias, (0, k_pad - K)).reshape(k_pad, 1)
    hiv_p = jnp.pad(half_inv_var, (0, k_pad - K)).reshape(k_pad, 1)

    stream_bytes = stream_dtype.itemsize
    cap, budget = _vmem_caps()
    tile_n, tile_d = _select_tiles(N, D, k_pad, stream_bytes, budget, preferred_tile_n)

    ws = _working_set_bytes(tile_n, tile_d, k_pad, stream_bytes)
    vmem_limit = int(min(cap, max(32 * 1024 * 1024, 2 * ws)))

    grid = (pl.cdiv(N, tile_n), D // tile_d)

    out = pl.pallas_call(
        gmm_kernel,
        out_shape=jax.ShapeDtypeStruct((k_pad, N), jnp.float32),
        grid=grid,
        in_specs=[
            pl.BlockSpec((tile_n, tile_d), lambda i, d: (i, d)),  # X streamed over N, D
            pl.BlockSpec((1, tile_n), lambda i, d: (0, i)),       # ||x||^2 streamed over N
            pl.BlockSpec((k_pad, tile_d), lambda i, d: (0, d)),   # mu/var streamed over D
            pl.BlockSpec((k_pad, 1), lambda i, d: (0, 0)),        # bias (resident)
            pl.BlockSpec((k_pad, 1), lambda i, d: (0, 0)),        # 0.5/var (resident)
        ],
        out_specs=pl.BlockSpec((k_pad, tile_n), lambda i, d: (0, i)),
        compiler_params=pltpu.CompilerParams(
            dimension_semantics=("parallel", "arbitrary"),
            vmem_limit_bytes=vmem_limit),
    )(x_stream, x_sq, smu_p, bias_p, hiv_p)

    # NOTE: the ragged last N tile multiplies undefined X rows, but those only
    # produce output lanes >= N inside the block and the masked writeback drops
    # them; padded K rows are sliced off here.  Do not rely on rows >= K.
    return out[:K]


def gmm_reference(x, mu, logvar, alpha):
    # Pure-JAX reference mirroring the PyTorch forward exactly.
    D = x.shape[1]
    diff = x[None, :, :] - mu[:, None, :]                 # (K, N, D)
    a = jnp.sum(diff * diff, axis=2)                      # (K, N) == norm(dim=2)**2
    b = jnp.exp(logvar)[:, None]                          # (K, 1)
    norm_const = 0.5 * jnp.log(2.0 * jnp.pi) * D
    return (alpha[:, None]
            - 0.5 * D * logvar[:, None]
            - 0.5 * (a / b)
            - norm_const)


if __name__ == "__main__":
    # Small shapes consistent with the module: N examples, D features, K centroids.
    N, D, K = 16, 32, 8

    key = jax.random.PRNGKey(0)
    k_x, k_mu, k_lv = jax.random.split(key, 3)

    x = jax.random.normal(k_x, (N, D), dtype=jnp.float32)
    # nn.Parameter(torch.rand(...)) semantics -> uniform [0,1) init
    mu = jax.random.uniform(k_mu, (K, D), dtype=jnp.float32)
    logvar = jax.random.uniform(k_lv, (K,), dtype=jnp.float32)
    alpha = jnp.full((K,), jnp.log(1.0 / K), dtype=jnp.float32)

    out = gmm_forward(x, mu, logvar, alpha)
    out = jax.block_until_ready(out)

    ref = gmm_reference(x, mu, logvar, alpha)
    assert out.shape == (K, N)
    # Expanded ||x-mu||^2 in f32: 1e-3 tolerance holds for well-scaled inputs.
    assert jnp.allclose(out, ref, atol=1e-3, rtol=1e-3), "mismatch vs reference"

    print("KERNEL_OK")
</pallas_src>

<mosaic_0001>
module attributes {stable_mosaic.version = 11 : i64} {
  func.func @gmm_kernel(%arg0: i32, %arg1: i32, %arg2: memref<16x32xf32, #tpu.memory_space<vmem>>, %arg3: memref<1x16xf32, #tpu.memory_space<vmem>>, %arg4: memref<8x32xf32, #tpu.memory_space<vmem>>, %arg5: memref<8x1xf32, #tpu.memory_space<vmem>>, %arg6: memref<8x1xf32, #tpu.memory_space<vmem>>, %arg7: memref<8x16xf32, #tpu.memory_space<vmem>>) attributes {dimension_semantics = [#tpu.dimension_semantics<parallel>, #tpu.dimension_semantics<arbitrary>], iteration_bounds = array<i64: 1, 1>, scalar_prefetch = 0 : i64, scratch_operands = 0 : i64, tpu.core_type = #tpu.core_type<tc>, window_params = [{transform_indices = @transform_0, window_bounds = array<i64: 16, 32>}, {transform_indices = @transform_1, window_bounds = array<i64: 1, 16>}, {transform_indices = @transform_2, window_bounds = array<i64: 8, 32>}, {pipeline_mode = #tpu.pipeline_mode<synchronous>, transform_indices = @transform_3, window_bounds = array<i64: 8, 1>}, {pipeline_mode = #tpu.pipeline_mode<synchronous>, transform_indices = @transform_4, window_bounds = array<i64: 8, 1>}, {transform_indices = @transform_5, window_bounds = array<i64: 8, 16>}]} {
    %c0_i32 = arith.constant 0 : i32
    %0 = arith.cmpi eq, %arg1, %c0_i32 : i32
    %1 = arith.extui %0 : i1 to i32
    %c0_i32_0 = arith.constant 0 : i32
    %2 = arith.cmpi ne, %1, %c0_i32_0 : i32
    scf.if %2 {
      %c0_8 = arith.constant 0 : index
      %c0_9 = arith.constant 0 : index
      %9 = vector.load %arg5[%c0_8, %c0_9] : memref<8x1xf32, #tpu.memory_space<vmem>>, vector<8x1xf32>
      %c0_10 = arith.constant 0 : index
      %c0_11 = arith.constant 0 : index
      %10 = vector.load %arg6[%c0_10, %c0_11] : memref<8x1xf32, #tpu.memory_space<vmem>>, vector<8x1xf32>
      %c0_12 = arith.constant 0 : index
      %c0_13 = arith.constant 0 : index
      %11 = vector.load %arg3[%c0_12, %c0_13] : memref<1x16xf32, #tpu.memory_space<vmem>>, vector<1x16xf32>
      %12 = vector.broadcast %10 : vector<8x1xf32> to vector<8x16xf32>
      %13 = vector.broadcast %11 : vector<1x16xf32> to vector<8x16xf32>
      %14 = arith.mulf %12, %13 : vector<8x16xf32>
      %15 = vector.broadcast %9 : vector<8x1xf32> to vector<8x16xf32>
      %16 = arith.subf %15, %14 : vector<8x16xf32>
      %c0_14 = arith.constant 0 : index
      %c0_15 = arith.constant 0 : index
      %17 = vector.load %arg7[%c0_14, %c0_15] : memref<8x16xf32, #tpu.memory_space<vmem>>, vector<8x16xf32>
      tpu.vector_store %arg7[%c0_14, %c0_15], %16 {strides = array<i32>} : memref<8x16xf32, #tpu.memory_space<vmem>>, vector<8x16xf32>,
    } else {
    }
    %c0 = arith.constant 0 : index
    %c0_1 = arith.constant 0 : index
    %3 = vector.load %arg7[%c0, %c0_1] : memref<8x16xf32, #tpu.memory_space<vmem>>, vector<8x16xf32>
    %c0_2 = arith.constant 0 : index
    %c0_3 = arith.constant 0 : index
    %4 = vector.load %arg4[%c0_2, %c0_3] : memref<8x32xf32, #tpu.memory_space<vmem>>, vector<8x32xf32>
    %c0_4 = arith.constant 0 : index
    %c0_5 = arith.constant 0 : index
    %5 = vector.load %arg2[%c0_4, %c0_5] : memref<16x32xf32, #tpu.memory_space<vmem>>, vector<16x32xf32>
    %cst = arith.constant dense<0.000000e+00> : vector<8x16xf32>
    %6 = tpu.matmul %4, %5, %cst {dimension_numbers = #tpu.dot_dimension_numbers<[1], [1], [0], [0], [0, 0, 1, 0], [], []>} : vector<8x32xf32>, vector<16x32xf32>, vector<8x16xf32> -> vector<8x16xf32>
    %7 = arith.addf %3, %6 : vector<8x16xf32>
    %c0_6 = arith.constant 0 : index
    %c0_7 = arith.constant 0 : index
    %8 = vector.load %arg7[%c0_6, %c0_7] : memref<8x16xf32, #tpu.memory_space<vmem>>, vector<8x16xf32>
    tpu.vector_store %arg7[%c0_6, %c0_7], %7 {strides = array<i32>} : memref<8x16xf32, #tpu.memory_space<vmem>>, vector<8x16xf32>,
    return
  }
  func.func @transform_0(%arg0: i32, %arg1: i32) -> (i32, i32) {
    %c0_i32 = arith.constant 0 : i32
    return %arg0, %arg1 : i32, i32
  }
  func.func @transform_1(%arg0: i32, %arg1: i32) -> (i32, i32) {
    %c0_i32 = arith.constant 0 : i32
    %c0_i32_0 = arith.constant 0 : i32
    return %c0_i32, %arg0 : i32, i32
  }
  func.func @transform_2(%arg0: i32, %arg1: i32) -> (i32, i32) {
    %c0_i32 = arith.constant 0 : i32
    %c0_i32_0 = arith.constant 0 : i32
    return %c0_i32, %arg1 : i32, i32
  }
  func.func @transform_3(%arg0: i32, %arg1: i32) -> (i32, i32) {
    %c0_i32 = arith.constant 0 : i32
    %c0_i32_0 = arith.constant 0 : i32
    %c0_i32_1 = arith.constant 0 : i32
    return %c0_i32, %c0_i32_0 : i32, i32
  }
  func.func @transform_4(%arg0: i32, %arg1: i32) -> (i32, i32) {
    %c0_i32 = arith.constant 0 : i32
    %c0_i32_0 = arith.constant 0 : i32
    %c0_i32_1 = arith.constant 0 : i32
    return %c0_i32, %c0_i32_0 : i32, i32
  }
  func.func @transform_5(%arg0: i32, %arg1: i32) -> (i32, i32) {
    %c0_i32 = arith.constant 0 : i32
    %c0_i32_0 = arith.constant 0 : i32
    return %c0_i32, %arg0 : i32, i32
  }
}

</mosaic_0001>

<llo_original>
// kernel: tpu_custom_call.1
$region0: #{tpu_custom_call.1}
  #allocation0 [shape = 'u32[]', space=smem, size = 0x4, offset = 0x4, fixed_abs, tag = 'smem constant byte address 0x4 - core index']
  #allocation1 [shape = 'u32[72,128]{1,0:T(1,128)}', space=vmem, size = 0x9000, scoped, tag = 'internal scratch']
  %s0 = inlined_call_operand.vmem [shape: f32[16,32], index: 0, kind: input, shape index: {}]
  %s1 = inlined_call_operand.vmem [shape: f32[1,16], index: 1, kind: input, shape index: {}]
  %s2 = inlined_call_operand.hbm [shape: f32[8,32], index: 2, kind: input, shape index: {}]
  %s3 = inlined_call_operand.vmem [shape: f32[8,1], index: 3, kind: input, shape index: {}]
  %s4 = inlined_call_operand.vmem [shape: f32[8,1], index: 4, kind: input, shape index: {}]
  %s5 = inlined_call_operand.hbm [shape: f32[8,16], index: 5, kind: output, shape index: {}]
  %s6 = sld [smem:[#allocation0]]
  $region38: #{tpu_custom_call.1} parent=0
    _
  %s8 = ssub.s32 1, %s6
  %s9 = scalar_select 0, %s8, %s6
  $region1: #{tpu_custom_call.1} parent=0
    #allocation2 [shape = 'u8[4096]{0}', space=vmem, size = 0x1000, scoped, tag = 'input window, operand 2, single buffered']
    #allocation3 [shape = 's32[1]{0}', space=sflag, size = 0x4, scoped, tag = 'scoped memory for tpu_custom_call.1']
    #allocation4 [shape = 's32[1]{0}', space=sflag, size = 0x4, scoped, tag = 'scoped memory for tpu_custom_call.1']
    #allocation5 [shape = 'u8[4096]{0}', space=vmem, size = 0x1000, scoped, tag = 'output window, operand 0, single buffered']
    %10 = vsyncpa [#allocation3], 0
    %11 = vsyncpa [#allocation4], 0
    // Predicated region
    $region2: #{tpu_custom_call.1} parent=1 // pred_check
      _
    $region3: #{tpu_custom_call.1} parent=1 // pred_check_branch
      %13 = sbr.rel (0) target = $region5
    $region4: #{tpu_custom_call.1} parent=1 // pred_region
      _
    $region5: #{tpu_custom_call.1} parent=1 // pred_fallthru
      _
    // Predicated region
    $region6: #{tpu_custom_call.1} parent=1 // pred_check
      _
    $region7: #{tpu_custom_call.1} parent=1 // pred_check_branch
      %15 = sbr.rel (0) target = $region9
    $region8: #{tpu_custom_call.1} parent=1 // pred_region
      _
    $region9: #{tpu_custom_call.1} parent=1 // pred_fallthru
      _
    // Predicated region
    $region10: #{tpu_custom_call.1} parent=1 // pred_check
      _
    $region11: #{tpu_custom_call.1} parent=1 // pred_check_branch
      %17 = sbr.rel (0) target = $region13
    $region12: #{tpu_custom_call.1} parent=1 // pred_region
      %19 = vsyncadd [#allocation3], 0
      %s21 = sshll.u32 %s2, 4
      %s22 = int_to_ptr.hbm [resolvable:$true] %s21
      %s23 = sshll.u32 [#allocation2], 4
      %s24 = int_to_ptr.vmem [resolvable:$true] %s23
      %26 = dma.hbm_to_vmem [thread:$0]  %s22, 128, %s24, [#allocation3]
    $region13: #{tpu_custom_call.1} parent=1 // pred_fallthru
      _
    // Predicated region
    $region14: #{tpu_custom_call.1} parent=1 // pred_check
      _
    $region15: #{tpu_custom_call.1} parent=1 // pred_check_branch
      %28 = sbr.rel (0) target = $region17
    $region16: #{tpu_custom_call.1} parent=1 // pred_region
      _
    $region17: #{tpu_custom_call.1} parent=1 // pred_fallthru
      _
    // Predicated region
    $region18: #{tpu_custom_call.1} parent=1 // pred_check
      _
    $region19: #{tpu_custom_call.1} parent=1 // pred_check_branch
      %30 = sbr.rel (0) target = $region21
    $region20: #{tpu_custom_call.1} parent=1 // pred_region
      _
    $region21: #{tpu_custom_call.1} parent=1 // pred_fallthru
      _
    // Predicated region
    $region22: #{tpu_custom_call.1} parent=1 // pred_check
      _
    $region23: #{tpu_custom_call.1} parent=1 // pred_check_branch
      %32 = sbr.rel (0) target = $region25
    $region24: #{tpu_custom_call.1} parent=1 // pred_region
      %34 = dma.done [#allocation3], 128
    $region25: #{tpu_custom_call.1} parent=1 // pred_fallthru
      _
    %p35 = scmp.eq.s32.totalorder 0, 0
    // Predicated region
    $region26: #{tpu_custom_call.1} parent=1 // pred_check
      %p36 = pneg %p35
    $region27: #{tpu_custom_call.1} parent=1 // pred_check_branch
      %38 = sbr.rel (%p36) target = $region29
    $region28: #{tpu_custom_call.1} parent=1 // pred_region
      %v39 = vld [vmem:[%s3] sm:$0xff]
      %v40 = vld [vmem:[%s4] sm:$0xff]
      %v41 = vld [vmem:[%s1] sm:$0x1]
      %43 = vset.pattern.permute.xlu0 0
      %44 = vperm.xlu0 %43, %v40
      %v45 = vpop.permute.xlu0 %44
      %v48 = vperm.slane %v41, 0
      %v50 = vmul.f32 %v45, %v48
      %52 = vset.pattern.permute.xlu0 0
      %53 = vperm.xlu0 %52, %v39
      %v54 = vpop.permute.xlu0 %53
      %v56 = vsub.f32 %v54, %v50
      %vm57 = vcmask 130048
      %58 = vst.msk [vmem:[#allocation5] sm:$0xff] %vm57, %v56
    $region29: #{tpu_custom_call.1} parent=1 // pred_fallthru
      _
    %v59 = vld [vmem:[#allocation5] sm:$0xff]
    %v60 = vld [vmem:[#allocation2] sm:$0xff]
    %v61 = vld [vmem:[%s0] sm:$0xff]
    %v62 = vld [vmem:[%s0 + $0x8] sm:$0xff]
    %vm63 = vcmask 261120
    %v65 = vsel %vm63, %v60, 0
    %v68 = vsel %vm63, %v61, 0
    %v71 = vsel %vm63, %v62, 0
    %73 = vmatpush.xpose.msra.mxu0 0.0
    %74 = vmatpush.xpose.msra.mxu0 0.0
    %75 = vmatpush.xpose.msra.mxu0 0.0
    %76 = vmatpush.xpose.msra.mxu0 0.0
    %77 = vmatpush.xpose.msra.mxu0 0.0
    %78 = vmatpush.xpose.msra.mxu0 0.0
    %79 = vmatpush.xpose.msra.mxu0 0.0
    %80 = vmatpush.xpose.msra.mxu0 0.0
    %81 = vmatpush.xpose.msra.mxu0 0.0
    %82 = vmatpush.xpose.msra.mxu0 0.0
    %83 = vmatpush.xpose.msra.mxu0 0.0
    %84 = vmatpush.xpose.msra.mxu0 0.0
    %85 = vmatpush.xpose.msra.mxu0 0.0
    %86 = vmatpush.xpose.msra.mxu0 0.0
    %87 = vmatpush.xpose.msra.mxu0 %v71
    %88 = vmatpush.xpose.msra.mxu0 %v68
    %89 = vmatmul.f32.gmra.mxu0 %v65
    %v90 = vpop.f32.mrf.mxu0
    %v91 = vadd.f32 0.0, %v90
    %92 = vdwg.mxu0
    %v93 = vadd.f32 %v59, %v91
    %vm94 = vcmask 130048
    %95 = vst.msk [vmem:[#allocation5] sm:$0xff] %vm94, %v93
    // Predicated region
    $region30: #{tpu_custom_call.1} parent=1 // pred_check
      _
    $region31: #{tpu_custom_call.1} parent=1 // pred_check_branch
      %97 = sbr.rel (0) target = $region33
    $region32: #{tpu_custom_call.1} parent=1 // pred_region
      %99 = vsyncadd [#allocation4], 0
      %s101 = sshll.u32 [#allocation5], 4
      %s102 = int_to_ptr.vmem [resolvable:$true] %s101
      %s103 = sshll.u32 %s5, 4
      %s104 = int_to_ptr.hbm [resolvable:$true] %s103
      %106 = dma.vmem_to_hbm [thread:$0]  %s102, 128, %s104, [#allocation4]
    $region33: #{tpu_custom_call.1} parent=1 // pred_fallthru
      _
    // Predicated region
    $region34: #{tpu_custom_call.1} parent=1 // pred_check
      _
    $region35: #{tpu_custom_call.1} parent=1 // pred_check_branch
      %108 = sbr.rel (0) target = $region37
    $region36: #{tpu_custom_call.1} parent=1 // pred_region
      %110 = dma.done [#allocation4], 128
    $region37: #{tpu_custom_call.1} parent=1 // pred_fallthru
      _
    %111 = vsyncpa [#allocation3], 1
    %112 = vsyncpa [#allocation4], 1

</llo_original>
